<compile_context>
chip_gen: v5e
topology: v5e:2x2
jax: 0.10.0
libtpu: 0.0.40
codegen_flags: <defaults>
</compile_context>

<pallas_src>
import functools

import jax
import jax.numpy as jnp
from jax.experimental import pallas as pl
from jax.experimental.pallas import tpu as pltpu

LANES = 128
SUBLANES = 8
DEFAULT_BLOCK_ROWS = 4096  # 4096 x 128 x 4B = 2 MiB per f32 block


def _loss_kernel(yhat_ref, y_ref, out_ref, acc_ref, *, total_n, rows, block_rows):
    """Streaming sum((d)^2) / sum(|d|) with a vreg-shaped VMEM accumulator.

    yhat_ref, y_ref : (block_rows, LANES) VMEM tiles (native dtype)
    out_ref         : (3,) f32 SMEM  -> [mse, rmse, mae]
    acc_ref         : (2, 8, LANES) f32 VMEM -> [sum_sq, sum_abs] partials
    """
    i = pl.program_id(0)

    @pl.when(i == 0)
    def _():
        acc_ref[...] = jnp.zeros_like(acc_ref)

    diff = yhat_ref[...].astype(jnp.float32) - y_ref[...].astype(jnp.float32)

    # Mask rows past the end of the (padded) array; only needed when the last
    # grid block is partial. Static condition -> no cost otherwise.
    if rows % block_rows != 0:
        row_ids = i * block_rows + jax.lax.broadcasted_iota(
            jnp.int32, (block_rows, LANES), 0
        )
        diff = jnp.where(row_ids < rows, diff, 0.0)

    # Fold the (block_rows, LANES) tile into vreg-shaped (8, LANES) partials
    # using only VPU elementwise adds (no per-step cross-lane reduction).
    d = diff.reshape(block_rows // SUBLANES, SUBLANES, LANES)
    acc_ref[0] += jnp.sum(d * d, axis=0)
    acc_ref[1] += jnp.sum(jnp.abs(d), axis=0)

    @pl.when(i == pl.num_programs(0) - 1)
    def _():
        inv_n = jnp.float32(1.0 / total_n)
        mse = jnp.sum(acc_ref[0]) * inv_n
        out_ref[0] = mse
        out_ref[1] = jnp.sqrt(mse)
        out_ref[2] = jnp.sum(acc_ref[1]) * inv_n


def base_model_losses(yhat, y, block_rows=DEFAULT_BLOCK_ROWS):
    """Compute (mse, rmse, mae) exactly as BaseModel's loss path does.

    yhat, y: arrays of identical shape (e.g. NCHW), any float dtype, any size.
    Returns a (3,) float32 array: [mse, rmse, mae].
    """
    assert yhat.shape == y.shape, (yhat.shape, y.shape)
    total_n = yhat.size

    yhat_flat = yhat.reshape(-1)
    y_flat = y.reshape(-1)

    # Pad (in native dtype) to a multiple of 8*128 so the (rows, 128) view
    # tiles cleanly. Identical zero padding on both inputs => diff == 0 there.
    chunk = SUBLANES * LANES
    padded_n = ((total_n + chunk - 1) // chunk) * chunk
    if padded_n != total_n:
        pad = padded_n - total_n
        yhat_flat = jnp.pad(yhat_flat, (0, pad))
        y_flat = jnp.pad(y_flat, (0, pad))

    rows = padded_n // LANES
    yhat2 = yhat_flat.reshape(rows, LANES)
    y2 = y_flat.reshape(rows, LANES)

    # Largest block <= requested, multiple of 8 sublanes, no bigger than array.
    blk = min(block_rows, rows)
    blk = max(SUBLANES, (blk // SUBLANES) * SUBLANES)
    grid = (pl.cdiv(rows, blk),)

    kernel = functools.partial(
        _loss_kernel, total_n=total_n, rows=rows, block_rows=blk
    )

    out = pl.pallas_call(
        kernel,
        out_shape=jax.ShapeDtypeStruct((3,), jnp.float32),
        grid_spec=pltpu.PrefetchScalarGridSpec(
            num_scalar_prefetch=0,
            grid=grid,
            in_specs=[
                pl.BlockSpec((blk, LANES), lambda i: (i, 0)),
                pl.BlockSpec((blk, LANES), lambda i: (i, 0)),
            ],
            out_specs=pl.BlockSpec(memory_space=pltpu.SMEM),
            scratch_shapes=[pltpu.VMEM((2, SUBLANES, LANES), jnp.float32)],
        ),
        compiler_params=pltpu.CompilerParams(
            # single reduction axis; output/accumulator resident across it
            dimension_semantics=("arbitrary",),
        ),
    )(yhat2, y2)
    return out  # (3,) = [mse, rmse, mae]


def _reference(yhat, y):
    d = yhat.astype(jnp.float32) - y.astype(jnp.float32)
    mse = jnp.mean(d * d)
    return float(mse), float(jnp.sqrt(mse)), float(jnp.mean(jnp.abs(d)))


def _check(yhat, y, tol=1e-4, **kw):
    losses = jax.block_until_ready(base_model_losses(yhat, y, **kw))
    mse_k, rmse_k, mae_k = [float(v) for v in losses]
    mse_r, rmse_r, mae_r = _reference(yhat, y)
    assert abs(mse_k - mse_r) <= tol * max(1.0, abs(mse_r)), (mse_k, mse_r)
    assert abs(rmse_k - rmse_r) <= tol * max(1.0, abs(rmse_r)), (rmse_k, rmse_r)
    assert abs(mae_k - mae_r) <= tol * max(1.0, abs(mae_r)), (mae_k, mae_r)


if __name__ == "__main__":
    key = jax.random.PRNGKey(0)
    k1, k2, k3, k4, k5, k6 = jax.random.split(key, 6)

    # Primary demo: NCHW outputs as a conv-style model would produce (B=2, C=4, H=16, W=16).
    yhat = jax.random.normal(k1, (2, 4, 16, 16), dtype=jnp.float32)
    y = jax.random.normal(k2, (2, 4, 16, 16), dtype=jnp.float32)
    _check(yhat, y)

    # Partial-final-block path (rows=24, block=16 -> masked last block), bf16 inputs.
    yhat_b = jax.random.normal(k3, (3, 8, 128), dtype=jnp.bfloat16)
    y_b = jax.random.normal(k4, (3, 8, 128), dtype=jnp.bfloat16)
    _check(yhat_b, y_b, block_rows=16)

    # Non-multiple-of-1024 element count (zero-padding path).
    yhat_c = jax.random.normal(k5, (5, 7, 9), dtype=jnp.float32)
    y_c = jax.random.normal(k6, (5, 7, 9), dtype=jnp.float32)
    _check(yhat_c, y_c)

    print("KERNEL_OK")
</pallas_src>

<mosaic_0001>
module attributes {stable_mosaic.version = 11 : i64} {
  func.func @_loss_kernel(%arg0: i32, %arg1: memref<16x128xf32, #tpu.memory_space<vmem>>, %arg2: memref<16x128xf32, #tpu.memory_space<vmem>>, %arg3: memref<3xf32, #tpu.memory_space<smem>>, %arg4: memref<2x8x128xf32, #tpu.memory_space<vmem>>) attributes {dimension_semantics = [#tpu.dimension_semantics<arbitrary>], iteration_bounds = array<i64: 1>, scalar_prefetch = 0 : i64, scratch_operands = 1 : i64, tpu.core_type = #tpu.core_type<tc>, window_params = [{transform_indices = @transform_0, window_bounds = array<i64: 16, 128>}, {transform_indices = @transform_1, window_bounds = array<i64: 16, 128>}, {transform_indices = @transform_2, window_bounds = array<i64: 3>}]} {
    %c0_i32 = arith.constant 0 : i32
    %0 = arith.cmpi eq, %arg0, %c0_i32 : i32
    %1 = arith.extui %0 : i1 to i32
    %c0_i32_0 = arith.constant 0 : i32
    %2 = arith.cmpi ne, %1, %c0_i32_0 : i32
    scf.if %2 {
      %cst_18 = arith.constant 0.000000e+00 : f32
      %26 = vector.broadcast %cst_18 : f32 to vector<2x8x128xf32>
      %c0_19 = arith.constant 0 : index
      %c0_20 = arith.constant 0 : index
      %c0_21 = arith.constant 0 : index
      %27 = vector.load %arg4[%c0_19, %c0_20, %c0_21] : memref<2x8x128xf32, #tpu.memory_space<vmem>>, vector<2x8x128xf32>
      tpu.vector_store %arg4[%c0_19, %c0_20, %c0_21], %26 {strides = array<i32>} : memref<2x8x128xf32, #tpu.memory_space<vmem>>, vector<2x8x128xf32>,
    } else {
    }
    %c0 = arith.constant 0 : index
    %c0_1 = arith.constant 0 : index
    %3 = vector.load %arg1[%c0, %c0_1] : memref<16x128xf32, #tpu.memory_space<vmem>>, vector<16x128xf32>
    %c0_2 = arith.constant 0 : index
    %c0_3 = arith.constant 0 : index
    %4 = vector.load %arg2[%c0_2, %c0_3] : memref<16x128xf32, #tpu.memory_space<vmem>>, vector<16x128xf32>
    %5 = arith.subf %3, %4 : vector<16x128xf32>
    %6 = vector.shape_cast %5 : vector<16x128xf32> to vector<2x8x128xf32>
    %c0_4 = arith.constant 0 : index
    %c0_5 = arith.constant 0 : index
    %c0_6 = arith.constant 0 : index
    %7 = vector.load %arg4[%c0_4, %c0_5, %c0_6] : memref<2x8x128xf32, #tpu.memory_space<vmem>>, vector<1x8x128xf32>
    %8 = vector.shape_cast %7 : vector<1x8x128xf32> to vector<8x128xf32>
    %9 = arith.mulf %6, %6 : vector<2x8x128xf32>
    %cst = arith.constant dense<0.000000e+00> : vector<8x128xf32>
    %10 = vector.multi_reduction <add>, %9, %cst [0] : vector<2x8x128xf32> to vector<8x128xf32>
    %11 = arith.addf %8, %10 : vector<8x128xf32>
    %c0_7 = arith.constant 0 : index
    %c0_8 = arith.constant 0 : index
    %c0_9 = arith.constant 0 : index
    %12 = vector.load %arg4[%c0_7, %c0_8, %c0_9] : memref<2x8x128xf32, #tpu.memory_space<vmem>>, vector<1x8x128xf32>
    %13 = vector.shape_cast %12 : vector<1x8x128xf32> to vector<8x128xf32>
    %14 = vector.shape_cast %11 : vector<8x128xf32> to vector<1x8x128xf32>
    tpu.vector_store %arg4[%c0_7, %c0_8, %c0_9], %14 {strides = array<i32>} : memref<2x8x128xf32, #tpu.memory_space<vmem>>, vector<1x8x128xf32>,
    %c1 = arith.constant 1 : index
    %c0_10 = arith.constant 0 : index
    %c0_11 = arith.constant 0 : index
    %15 = vector.load %arg4[%c1, %c0_10, %c0_11] : memref<2x8x128xf32, #tpu.memory_space<vmem>>, vector<1x8x128xf32>
    %16 = vector.shape_cast %15 : vector<1x8x128xf32> to vector<8x128xf32>
    %17 = math.absf %6 : vector<2x8x128xf32>
    %cst_12 = arith.constant dense<0.000000e+00> : vector<8x128xf32>
    %18 = vector.multi_reduction <add>, %17, %cst_12 [0] : vector<2x8x128xf32> to vector<8x128xf32>
    %19 = arith.addf %16, %18 : vector<8x128xf32>
    %c1_13 = arith.constant 1 : index
    %c0_14 = arith.constant 0 : index
    %c0_15 = arith.constant 0 : index
    %20 = vector.load %arg4[%c1_13, %c0_14, %c0_15] : memref<2x8x128xf32, #tpu.memory_space<vmem>>, vector<1x8x128xf32>
    %21 = vector.shape_cast %20 : vector<1x8x128xf32> to vector<8x128xf32>
    %22 = vector.shape_cast %19 : vector<8x128xf32> to vector<1x8x128xf32>
    tpu.vector_store %arg4[%c1_13, %c0_14, %c0_15], %22 {strides = array<i32>} : memref<2x8x128xf32, #tpu.memory_space<vmem>>, vector<1x8x128xf32>,
    %c0_i32_16 = arith.constant 0 : i32
    %23 = arith.cmpi eq, %arg0, %c0_i32_16 : i32
    %24 = arith.extui %23 : i1 to i32
    %c0_i32_17 = arith.constant 0 : i32
    %25 = arith.cmpi ne, %24, %c0_i32_17 : i32
    scf.if %25 {
      %c0_18 = arith.constant 0 : index
      %c0_19 = arith.constant 0 : index
      %c0_20 = arith.constant 0 : index
      %26 = vector.load %arg4[%c0_18, %c0_19, %c0_20] : memref<2x8x128xf32, #tpu.memory_space<vmem>>, vector<1x8x128xf32>
      %27 = vector.shape_cast %26 : vector<1x8x128xf32> to vector<8x128xf32>
      %28 = vector.shape_cast %27 : vector<8x128xf32> to vector<1x8x128xf32>
      %cst_21 = arith.constant dense<0.000000e+00> : vector<1xf32>
      %29 = vector.multi_reduction <add>, %28, %cst_21 [1, 2] : vector<1x8x128xf32> to vector<1xf32>
      %30 = vector.shape_cast %29 : vector<1xf32> to vector<1x1x1xf32>
      %31 = vector.extract %30[0, 0, 0] : f32 from vector<1x1x1xf32>
      %cst_22 = arith.constant 4.8828125E-4 : f32
      %32 = arith.mulf %31, %cst_22 : f32
      %c0_23 = arith.constant 0 : index
      %33 = memref.load %arg3[%c0_23] : memref<3xf32, #tpu.memory_space<smem>>
      memref.store %32, %arg3[%c0_23] : memref<3xf32, #tpu.memory_space<smem>>
      %34 = math.sqrt %32 : f32
      %c1_24 = arith.constant 1 : index
      %35 = memref.load %arg3[%c1_24] : memref<3xf32, #tpu.memory_space<smem>>
      memref.store %34, %arg3[%c1_24] : memref<3xf32, #tpu.memory_space<smem>>
      %c1_25 = arith.constant 1 : index
      %c0_26 = arith.constant 0 : index
      %c0_27 = arith.constant 0 : index
      %36 = vector.load %arg4[%c1_25, %c0_26, %c0_27] : memref<2x8x128xf32, #tpu.memory_space<vmem>>, vector<1x8x128xf32>
      %37 = vector.shape_cast %36 : vector<1x8x128xf32> to vector<8x128xf32>
      %38 = vector.shape_cast %37 : vector<8x128xf32> to vector<1x8x128xf32>
      %cst_28 = arith.constant dense<0.000000e+00> : vector<1xf32>
      %39 = vector.multi_reduction <add>, %38, %cst_28 [1, 2] : vector<1x8x128xf32> to vector<1xf32>
      %40 = vector.shape_cast %39 : vector<1xf32> to vector<1x1x1xf32>
      %41 = vector.extract %40[0, 0, 0] : f32 from vector<1x1x1xf32>
      %cst_29 = arith.constant 4.8828125E-4 : f32
      %42 = arith.mulf %41, %cst_29 : f32
      %c2 = arith.constant 2 : index
      %43 = memref.load %arg3[%c2] : memref<3xf32, #tpu.memory_space<smem>>
      memref.store %42, %arg3[%c2] : memref<3xf32, #tpu.memory_space<smem>>
    } else {
    }
    return
  }
  func.func @transform_0(%arg0: i32) -> (i32, i32) {
    %c0_i32 = arith.constant 0 : i32
    %c0_i32_0 = arith.constant 0 : i32
    return %arg0, %c0_i32 : i32, i32
  }
  func.func @transform_1(%arg0: i32) -> (i32, i32) {
    %c0_i32 = arith.constant 0 : i32
    %c0_i32_0 = arith.constant 0 : i32
    return %arg0, %c0_i32 : i32, i32
  }
  func.func @transform_2(%arg0: i32) -> i32 {
    %c0_i32 = arith.constant 0 : i32
    %c0_i32_0 = arith.constant 0 : i32
    return %c0_i32 : i32
  }
}

</mosaic_0001>

<llo_original>
// kernel: tpu_custom_call.1
$region0: #{tpu_custom_call.1}
  #allocation0 [shape = 'u32[]', space=smem, size = 0x4, offset = 0x4, fixed_abs, tag = 'smem constant byte address 0x4 - core index']
  #allocation1 [shape = 'u32[72,128]{1,0:T(1,128)}', space=vmem, size = 0x9000, scoped, tag = 'internal scratch']
  #allocation2 [shape = 'f32[2,8,128]{2,1,0:T(8,128)}', space=vmem, size = 0x2000, scoped, tag = 'scratch operand']
  %s0 = inlined_call_operand.hbm [shape: f32[16,128], index: 0, kind: input, shape index: {}]
  %s1 = inlined_call_operand.hbm [shape: f32[16,128], index: 1, kind: input, shape index: {}]
  %s2 = inlined_call_operand.hbm [shape: f32[3], index: 2, kind: output, shape index: {}]
  %s3 = sld [smem:[#allocation0]]
  $region34: #{tpu_custom_call.1} parent=0
    _
  %s5 = ssub.s32 1, %s3
  %s6 = scalar_select 0, %s5, %s3
  $region1: #{tpu_custom_call.1} parent=0
    #allocation3 [shape = 'u8[8192]{0}', space=vmem, size = 0x2000, scoped, tag = 'input window, operand 0, single buffered']
    #allocation4 [shape = 's32[1]{0}', space=sflag, size = 0x4, scoped, tag = 'scoped memory for tpu_custom_call.1']
    #allocation5 [shape = 's32[1]{0}', space=sflag, size = 0x4, scoped, tag = 'scoped memory for tpu_custom_call.1']
    #allocation6 [shape = 'u8[8192]{0}', space=vmem, size = 0x2000, scoped, tag = 'input window, operand 1, single buffered']
    #allocation7 [shape = 's32[1]{0}', space=sflag, size = 0x4, scoped, tag = 'scoped memory for tpu_custom_call.1']
    #allocation8 [shape = 'u8[512]{0}', space=smem, size = 0x200, scoped, tag = 'output window, operand 0, single buffered']
    %7 = vsyncpa [#allocation4], 0
    %8 = vsyncpa [#allocation7], 0
    %9 = vsyncpa [#allocation5], 0
    // Predicated region
    $region2: #{tpu_custom_call.1} parent=1 // pred_check
      _
    $region3: #{tpu_custom_call.1} parent=1 // pred_check_branch
      %11 = sbr.rel (0) target = $region5
    $region4: #{tpu_custom_call.1} parent=1 // pred_region
      %13 = vsyncadd [#allocation4], 0
      %s14 = sshll.u32 %s0, 4
      %s15 = int_to_ptr.hbm [resolvable:$true] %s14
      %s16 = sshll.u32 [#allocation3], 4
      %s17 = int_to_ptr.vmem [resolvable:$true] %s16
      %22 = dma.hbm_to_vmem [thread:$0]  %s15, 256, %s17, [#allocation4], 128, 128, 8
    $region5: #{tpu_custom_call.1} parent=1 // pred_fallthru
      _
    // Predicated region
    $region6: #{tpu_custom_call.1} parent=1 // pred_check
      _
    $region7: #{tpu_custom_call.1} parent=1 // pred_check_branch
      %24 = sbr.rel (0) target = $region9
    $region8: #{tpu_custom_call.1} parent=1 // pred_region
      %26 = vsyncadd [#allocation7], 0
      %s27 = sshll.u32 %s1, 4
      %s28 = int_to_ptr.hbm [resolvable:$true] %s27
      %s29 = sshll.u32 [#allocation6], 4
      %s30 = int_to_ptr.vmem [resolvable:$true] %s29
      %35 = dma.hbm_to_vmem [thread:$0]  %s28, 256, %s30, [#allocation7], 128, 128, 8
    $region9: #{tpu_custom_call.1} parent=1 // pred_fallthru
      _
    // Predicated region
    $region10: #{tpu_custom_call.1} parent=1 // pred_check
      _
    $region11: #{tpu_custom_call.1} parent=1 // pred_check_branch
      %37 = sbr.rel (0) target = $region13
    $region12: #{tpu_custom_call.1} parent=1 // pred_region
      %39 = dma.done [#allocation4], 256
    $region13: #{tpu_custom_call.1} parent=1 // pred_fallthru
      _
    // Predicated region
    $region14: #{tpu_custom_call.1} parent=1 // pred_check
      _
    $region15: #{tpu_custom_call.1} parent=1 // pred_check_branch
      %41 = sbr.rel (0) target = $region17
    $region16: #{tpu_custom_call.1} parent=1 // pred_region
      %43 = dma.done [#allocation7], 256
    $region17: #{tpu_custom_call.1} parent=1 // pred_fallthru
      _
    %p44 = scmp.eq.s32.totalorder 0, 0
    // Predicated region
    $region18: #{tpu_custom_call.1} parent=1 // pred_check
      %p45 = pneg %p44
    $region19: #{tpu_custom_call.1} parent=1 // pred_check_branch
      %47 = sbr.rel (%p45) target = $region21
    $region20: #{tpu_custom_call.1} parent=1 // pred_region
      %48 = vst [vmem:[#allocation2] sm:$0xff] 0.0
      %49 = vst [vmem:[#allocation2 + $0x8] sm:$0xff] 0.0
    $region21: #{tpu_custom_call.1} parent=1 // pred_fallthru
      _
    %v50 = vld [vmem:[#allocation3] sm:$0xff]
    %v51 = vld [vmem:[#allocation3 + $0x8] sm:$0xff]
    %v52 = vld [vmem:[#allocation6] sm:$0xff]
    %v53 = vld [vmem:[#allocation6 + $0x8] sm:$0xff]
    %v54 = vsub.f32 %v50, %v52
    %v55 = vsub.f32 %v51, %v53
    %v56 = vld [vmem:[#allocation2] sm:$0xff]
    %v57 = vmul.f32 %v54, %v54
    %v58 = vmul.f32 %v55, %v55
    %v59 = vadd.f32 %v57, %v58
    %v60 = vadd.f32 %v56, %v59
    %61 = vst [vmem:[#allocation2] sm:$0xff] %v60
    %s62 = scalar_lea.vmem [#allocation2], 8
    %v63 = vld [vmem:[%s62] sm:$0xff]
    %v64 = vand.u32 2147483647, %v54
    %v65 = vand.u32 2147483647, %v55
    %v66 = vadd.f32 %v64, %v65
    %v67 = vadd.f32 %v63, %v66
    %68 = vst [vmem:[%s62] sm:$0xff] %v67
    // Predicated region
    $region22: #{tpu_custom_call.1} parent=1 // pred_check
      %p69 = pneg %p44
    $region23: #{tpu_custom_call.1} parent=1 // pred_check_branch
      %71 = sbr.rel (%p69) target = $region25
    $region24: #{tpu_custom_call.1} parent=1 // pred_region
      %v72 = vld [vmem:[#allocation2] sm:$0xff]
      %73 = vadd.xlane.f32.xlu0 %v72
      %v74 = vpop.xlane.xlu0 %73
      %v75 = vrot.slane %v74, 4
      %v76 = vadd.f32 %v74, %v75
      %v77 = vrot.slane %v76, 2
      %v78 = vadd.f32 %v76, %v77
      %v79 = vrot.slane %v78, 1
      %v80 = vadd.f32 %v78, %v79
      %s81 = vtos %v80
      %s82 = smul.f32 %s81, 0.00048828125
      %s83 = scalar_lea.smem [#allocation8], 0
      %84 = sst [smem:[%s83]] %s82
      %v85 = vstv %s82
      %v86 = vrsqrt.pop %v85
      %v87 = vmul.f32 %v86, %v85
      %v88 = vmul.f32 %v87, %v86
      %v89 = vmul.f32 0.5, %v88
      %v90 = vsub.f32 1.5, %v89
      %v91 = vmul.f32 %v86, %v90
      %v92 = vmul.f32 %v85, %v91
      %vm93 = vcmp.eq.f32.partialorder %v85, inf
      %v94 = vsel %vm93, %v85, %v92
      %vm95 = vcmp.eq.f32.partialorder %v85, 0.0
      %v96 = vand.u32 %v85, 2147483648
      %v97 = vsel %vm95, %v96, %v94
      %s98 = vtos %v97
      %s99 = scalar_lea.smem [#allocation8], 1
      %100 = sst [smem:[%s99]] %s98
      %v101 = vld [vmem:[%s62] sm:$0xff]
      %102 = vadd.xlane.f32.xlu0 %v101
      %v103 = vpop.xlane.xlu0 %102
      %v104 = vrot.slane %v103, 4
      %v105 = vadd.f32 %v103, %v104
      %v106 = vrot.slane %v105, 2
      %v107 = vadd.f32 %v105, %v106
      %v108 = vrot.slane %v107, 1
      %v109 = vadd.f32 %v107, %v108
      %s110 = vtos %v109
      %s111 = smul.f32 %s110, 0.00048828125
      %s112 = scalar_lea.smem [#allocation8], 2
      %113 = sst [smem:[%s112]] %s111
    $region25: #{tpu_custom_call.1} parent=1 // pred_fallthru
      _
    // Predicated region
    $region26: #{tpu_custom_call.1} parent=1 // pred_check
      _
    $region27: #{tpu_custom_call.1} parent=1 // pred_check_branch
      %115 = sbr.rel (0) target = $region29
    $region28: #{tpu_custom_call.1} parent=1 // pred_region
      %117 = vsyncadd [#allocation5], 0
      %s119 = sshll.u32 %s2, 4
      %s120 = int_to_ptr.hbm [resolvable:$true] %s119
      %122 = dma.smem_to_hbm [#allocation8], 16, %s120, [#allocation5]
    $region29: #{tpu_custom_call.1} parent=1 // pred_fallthru
      _
    // Predicated region
    $region30: #{tpu_custom_call.1} parent=1 // pred_check
      _
    $region31: #{tpu_custom_call.1} parent=1 // pred_check_branch
      %124 = sbr.rel (0) target = $region33
    $region32: #{tpu_custom_call.1} parent=1 // pred_region
      %126 = dma.done [#allocation5], 16
    $region33: #{tpu_custom_call.1} parent=1 // pred_fallthru
      _
    %127 = sfence
    %128 = vsyncpa [#allocation4], 1
    %129 = vsyncpa [#allocation7], 1
    %130 = vsyncpa [#allocation5], 1

</llo_original>
